<compile_context>
chip_gen: v5e
topology: v5e:2x2
jax: 0.10.0
libtpu: 0.0.40
codegen_flags: <defaults>
</compile_context>

<pallas_src>
import functools

import jax
import jax.numpy as jnp
from jax import lax
from jax.experimental import pallas as pl
from jax.experimental.pallas import tpu as pltpu


_LANE = 128


def _make_masked_sse_kernel(tm, lane, steps_per_split, n_full_blocks, total_rows):
    """Builds the streaming masked-SSE kernel (closure over static sizes)."""

    def kernel(x_ref, t_ref, s_ref, sum_out_ref, cnt_out_ref, sum_acc, cnt_acc):
        c = pl.program_id(0)   # split axis (CORE_PARALLEL when n_splits > 1)
        i = pl.program_id(1)   # streaming / reduction ("arbitrary") axis

        # Zero this split's VMEM accumulators at the start of the split.
        @pl.when(i == 0)
        def _init():
            sum_acc[...] = jnp.zeros_like(sum_acc)
            cnt_acc[...] = jnp.zeros_like(cnt_acc)

        # Logical (unclamped) row-block handled by this step.  The index_map
        # clamps the actual DMA to the last real block; blocks whose logical
        # rows fall past total_rows are masked in the tail path below.
        blk = c * steps_per_split + i

        seg = s_ref[...].astype(jnp.int32)            # widen on the VPU (free)
        seg_mask = (seg >= 1) & (seg < 4)

        d = x_ref[...].astype(jnp.float32) - t_ref[...].astype(jnp.float32)
        sq = d * d

        # Fast path: fully in-range block -> seg mask only (no iota / row
        # compare on the hot loop).  jnp.where (not mask * sq) so NaN/garbage
        # outside the mask can never poison the sum.
        @pl.when(blk < n_full_blocks)
        def _interior():
            sum_acc[...] += jnp.where(seg_mask, sq, 0.0)
            cnt_acc[...] += seg_mask.astype(jnp.float32)

        # Slow path: partial tail block or clamped duplicate block -> also
        # mask rows whose global index is past the real row count.
        @pl.when(blk >= n_full_blocks)
        def _tail():
            row_ids = lax.broadcasted_iota(jnp.int32, (tm, lane), 0)
            row_valid = (blk * tm + row_ids) < total_rows
            m = seg_mask & row_valid
            sum_acc[...] += jnp.where(m, sq, 0.0)
            cnt_acc[...] += m.astype(jnp.float32)

        # One-time finalize per split: cross-sublane reduce (XLU) into a tiny
        # lane-dense (1, 128) output block.
        @pl.when(i == steps_per_split - 1)
        def _finalize():
            sum_out_ref[0] = jnp.sum(sum_acc[...], axis=0, keepdims=True)
            cnt_out_ref[0] = jnp.sum(cnt_acc[...], axis=0, keepdims=True)

    return kernel


def reconstruction_loss(inp, tgt, seg, *, tm_max=2048, n_splits=1):
    """Masked MSE loss, computed in a single streaming Pallas TPU kernel.

    n_splits=1 is right for single-TensorCore chips (v5e/v6e); pass
    n_splits=2 on a 2-TensorCore chip (v7x) to shard the stream across cores.
    """
    lane = _LANE
    n = inp.size

    flat_x = inp.reshape(-1)
    flat_t = tgt.reshape(-1)
    flat_s = seg.reshape(-1)

    # Only when numel is not a multiple of 128 do we pad the (<128-element)
    # lane tail so the free reshape to (rows, 128) is possible.  seg pads with
    # 0, which the [1, 4) mask excludes, so the result is unchanged.
    rem = n % lane
    if rem:
        pad = lane - rem
        flat_x = jnp.pad(flat_x, (0, pad))
        flat_t = jnp.pad(flat_t, (0, pad))
        flat_s = jnp.pad(flat_s, (0, pad))

    rows = flat_x.shape[0] // lane
    x2 = flat_x.reshape(rows, lane)
    t2 = flat_t.reshape(rows, lane)
    s2 = flat_s.reshape(rows, lane)

    # Row tile: full array when small (exact block), else a large tm_max-row
    # block (~1 MiB per f32 stream per step).  Double-buffered inputs +
    # resident scratch accumulators stay ~11 MiB at tm=2048.
    tm = rows if rows <= tm_max else tm_max
    nblocks = pl.cdiv(rows, tm)
    steps_per_split = pl.cdiv(nblocks, n_splits)
    last_block = nblocks - 1
    n_full_blocks = rows // tm   # blocks with every row in range

    def in_map(c, i):
        # Clamp so the DMA never walks past the array; out-of-range logical
        # blocks are fully masked inside the kernel (contribute zero).
        return (jnp.minimum(c * steps_per_split + i, last_block), 0)

    def out_map(c, i):
        return (c, 0, 0)

    kernel = _make_masked_sse_kernel(tm, lane, steps_per_split,
                                     n_full_blocks, rows)

    if n_splits > 1:
        dim_sems = (pltpu.CORE_PARALLEL, pltpu.ARBITRARY)
    else:
        dim_sems = (pltpu.ARBITRARY, pltpu.ARBITRARY)

    sum_parts, cnt_parts = pl.pallas_call(
        kernel,
        out_shape=(
            jax.ShapeDtypeStruct((n_splits, 1, lane), jnp.float32),
            jax.ShapeDtypeStruct((n_splits, 1, lane), jnp.float32),
        ),
        grid_spec=pltpu.PrefetchScalarGridSpec(
            num_scalar_prefetch=0,
            grid=(n_splits, steps_per_split),
            in_specs=[
                pl.BlockSpec((tm, lane), in_map),
                pl.BlockSpec((tm, lane), in_map),
                pl.BlockSpec((tm, lane), in_map),
            ],
            out_specs=[
                pl.BlockSpec((1, 1, lane), out_map),
                pl.BlockSpec((1, 1, lane), out_map),
            ],
            scratch_shapes=[
                pltpu.VMEM((tm, lane), jnp.float32),   # sum-of-squares acc
                pltpu.VMEM((tm, lane), jnp.float32),   # count acc
            ],
        ),
        compiler_params=pltpu.CompilerParams(
            dimension_semantics=dim_sems,
            vmem_limit_bytes=32 * 1024 * 1024,
        ),
    )(x2, t2, s2)

    # Tiny final reduction + divide (n_splits * 128 floats each) done by XLA.
    total_sum = jnp.sum(sum_parts)
    total_cnt = jnp.sum(cnt_parts)
    # NOTE: total_cnt == 0 (no voxel with label in [1,4)) gives NaN, matching
    # the PyTorch 0/0 fancy-indexing behaviour.
    return total_sum / total_cnt


def _reference_loss(inp, tgt, seg):
    mask = (seg >= 1) & (seg < 4)
    m = mask.astype(jnp.float32)
    diff = inp.astype(jnp.float32) - tgt.astype(jnp.float32)
    num = jnp.sum((diff ** 2) * m)
    den = jnp.sum(m)
    return num / den


if __name__ == "__main__":
    loss_fn = jax.jit(reconstruction_loss, static_argnames=("tm_max", "n_splits"))

    key = jax.random.PRNGKey(0)

    # Test 1: small NCHW shapes consistent with the module's forward
    # (single full block, fast path only).
    B, C, H, W = 2, 4, 16, 16
    k1, k2, k3, k4 = jax.random.split(key, 4)
    x = jax.random.normal(k1, (B, C, H, W), dtype=jnp.float32)
    t = jax.random.normal(k2, (B, C, H, W), dtype=jnp.float32)
    # Segmentation labels in [0, 6); fed as int8 (narrowest dtype, widened
    # in-kernel) — ~4x less HBM traffic than int32 for the seg stream.
    seg = jax.random.randint(k3, (B, C, H, W), 0, 6, dtype=jnp.int32).astype(jnp.int8)

    loss = jax.block_until_ready(loss_fn(x, t, seg))
    ref = jax.block_until_ready(_reference_loss(x, t, seg))
    assert jnp.allclose(loss, ref, rtol=1e-5, atol=1e-5), (loss, ref)

    # Test 2: odd sizes + small tile to exercise the lane-tail pad and the
    # partial-tail (row-masked) slow path.
    k5, k6, k7 = jax.random.split(k4, 3)
    shp = (2, 3, 17, 15)   # 1530 elements -> pad to 12 rows of 128
    x2 = jax.random.normal(k5, shp, dtype=jnp.float32)
    t2 = jax.random.normal(k6, shp, dtype=jnp.float32)
    s2 = jax.random.randint(k7, shp, 0, 6, dtype=jnp.int32).astype(jnp.int8)

    loss2 = jax.block_until_ready(loss_fn(x2, t2, s2, tm_max=8))
    ref2 = jax.block_until_ready(_reference_loss(x2, t2, s2))
    assert jnp.allclose(loss2, ref2, rtol=1e-5, atol=1e-5), (loss2, ref2)

    print("KERNEL_OK")
</pallas_src>

<mosaic_0001>
module attributes {stable_mosaic.version = 11 : i64} {
  func.func @kernel(%arg0: i32, %arg1: i32, %arg2: memref<16x128xf32, #tpu.memory_space<vmem>>, %arg3: memref<16x128xf32, #tpu.memory_space<vmem>>, %arg4: memref<16x128xi8, #tpu.memory_space<vmem>>, %arg5: memref<1x1x128xf32, #tpu.memory_space<vmem>>, %arg6: memref<1x1x128xf32, #tpu.memory_space<vmem>>, %arg7: memref<16x128xf32, #tpu.memory_space<vmem>>, %arg8: memref<16x128xf32, #tpu.memory_space<vmem>>) attributes {dimension_semantics = [#tpu.dimension_semantics<arbitrary>, #tpu.dimension_semantics<arbitrary>], iteration_bounds = array<i64: 1, 1>, scalar_prefetch = 0 : i64, scratch_operands = 2 : i64, tpu.core_type = #tpu.core_type<tc>, window_params = [{transform_indices = @transform_0, window_bounds = array<i64: 16, 128>}, {transform_indices = @transform_1, window_bounds = array<i64: 16, 128>}, {transform_indices = @transform_2, window_bounds = array<i64: 16, 128>}, {transform_indices = @transform_3, window_bounds = array<i64: 1, 1, 128>}, {transform_indices = @transform_4, window_bounds = array<i64: 1, 1, 128>}]} {
    %c0_i32 = arith.constant 0 : i32
    %0 = arith.cmpi eq, %arg1, %c0_i32 : i32
    %1 = arith.extui %0 : i1 to i32
    %c0_i32_0 = arith.constant 0 : i32
    %2 = arith.cmpi ne, %1, %c0_i32_0 : i32
    scf.if %2 {
      %cst = arith.constant 0.000000e+00 : f32
      %25 = vector.broadcast %cst : f32 to vector<16x128xf32>
      %c0_13 = arith.constant 0 : index
      %c0_14 = arith.constant 0 : index
      %26 = vector.load %arg7[%c0_13, %c0_14] : memref<16x128xf32, #tpu.memory_space<vmem>>, vector<16x128xf32>
      tpu.vector_store %arg7[%c0_13, %c0_14], %25 {strides = array<i32>} : memref<16x128xf32, #tpu.memory_space<vmem>>, vector<16x128xf32>,
      %cst_15 = arith.constant 0.000000e+00 : f32
      %27 = vector.broadcast %cst_15 : f32 to vector<16x128xf32>
      %c0_16 = arith.constant 0 : index
      %c0_17 = arith.constant 0 : index
      %28 = vector.load %arg8[%c0_16, %c0_17] : memref<16x128xf32, #tpu.memory_space<vmem>>, vector<16x128xf32>
      tpu.vector_store %arg8[%c0_16, %c0_17], %27 {strides = array<i32>} : memref<16x128xf32, #tpu.memory_space<vmem>>, vector<16x128xf32>,
    } else {
    }
    %c1_i32 = arith.constant 1 : i32
    %3 = arith.muli %arg0, %c1_i32 : i32
    %4 = arith.addi %3, %arg1 : i32
    %c0 = arith.constant 0 : index
    %c0_1 = arith.constant 0 : index
    %5 = vector.load %arg4[%c0, %c0_1] : memref<16x128xi8, #tpu.memory_space<vmem>>, vector<16x128xi8>
    %6 = arith.extsi %5 : vector<16x128xi8> to vector<16x128xi32>
    %c1_i32_2 = arith.constant 1 : i32
    %7 = vector.broadcast %c1_i32_2 : i32 to vector<16x128xi32>
    %8 = arith.cmpi sge, %6, %7 : vector<16x128xi32>
    %c4_i32 = arith.constant 4 : i32
    %9 = vector.broadcast %c4_i32 : i32 to vector<16x128xi32>
    %10 = arith.cmpi slt, %6, %9 : vector<16x128xi32>
    %11 = arith.andi %8, %10 : vector<16x128xi1>
    %c0_3 = arith.constant 0 : index
    %c0_4 = arith.constant 0 : index
    %12 = vector.load %arg2[%c0_3, %c0_4] : memref<16x128xf32, #tpu.memory_space<vmem>>, vector<16x128xf32>
    %c0_5 = arith.constant 0 : index
    %c0_6 = arith.constant 0 : index
    %13 = vector.load %arg3[%c0_5, %c0_6] : memref<16x128xf32, #tpu.memory_space<vmem>>, vector<16x128xf32>
    %14 = arith.subf %12, %13 : vector<16x128xf32>
    %15 = arith.mulf %14, %14 : vector<16x128xf32>
    %c1_i32_7 = arith.constant 1 : i32
    %16 = arith.cmpi slt, %4, %c1_i32_7 : i32
    %17 = arith.extui %16 : i1 to i32
    %c0_i32_8 = arith.constant 0 : i32
    %18 = arith.cmpi ne, %17, %c0_i32_8 : i32
    scf.if %18 {
      %c0_13 = arith.constant 0 : index
      %c0_14 = arith.constant 0 : index
      %25 = vector.load %arg7[%c0_13, %c0_14] : memref<16x128xf32, #tpu.memory_space<vmem>>, vector<16x128xf32>
      %cst = arith.constant 0.000000e+00 : f32
      %26 = vector.broadcast %cst : f32 to vector<16x128xf32>
      %27 = arith.select %11, %15, %26 : vector<16x128xi1>, vector<16x128xf32>
      %28 = arith.addf %25, %27 : vector<16x128xf32>
      %c0_15 = arith.constant 0 : index
      %c0_16 = arith.constant 0 : index
      %29 = vector.load %arg7[%c0_15, %c0_16] : memref<16x128xf32, #tpu.memory_space<vmem>>, vector<16x128xf32>
      tpu.vector_store %arg7[%c0_15, %c0_16], %28 {strides = array<i32>} : memref<16x128xf32, #tpu.memory_space<vmem>>, vector<16x128xf32>,
      %c0_17 = arith.constant 0 : index
      %c0_18 = arith.constant 0 : index
      %30 = vector.load %arg8[%c0_17, %c0_18] : memref<16x128xf32, #tpu.memory_space<vmem>>, vector<16x128xf32>
      %31 = arith.extui %11 : vector<16x128xi1> to vector<16x128xi32>
      %32 = arith.sitofp %31 : vector<16x128xi32> to vector<16x128xf32>
      %33 = arith.addf %30, %32 : vector<16x128xf32>
      %c0_19 = arith.constant 0 : index
      %c0_20 = arith.constant 0 : index
      %34 = vector.load %arg8[%c0_19, %c0_20] : memref<16x128xf32, #tpu.memory_space<vmem>>, vector<16x128xf32>
      tpu.vector_store %arg8[%c0_19, %c0_20], %33 {strides = array<i32>} : memref<16x128xf32, #tpu.memory_space<vmem>>, vector<16x128xf32>,
    } else {
    }
    %c1_i32_9 = arith.constant 1 : i32
    %19 = arith.cmpi sge, %4, %c1_i32_9 : i32
    %20 = arith.extui %19 : i1 to i32
    %c0_i32_10 = arith.constant 0 : i32
    %21 = arith.cmpi ne, %20, %c0_i32_10 : i32
    scf.if %21 {
      %25 = tpu.iota {dimensions = array<i32: 0>} : vector<16x128xi32>
      %c16_i32 = arith.constant 16 : i32
      %26 = arith.muli %4, %c16_i32 : i32
      %27 = vector.broadcast %26 : i32 to vector<16x128xi32>
      %28 = arith.addi %27, %25 : vector<16x128xi32>
      %c16_i32_13 = arith.constant 16 : i32
      %29 = vector.broadcast %c16_i32_13 : i32 to vector<16x128xi32>
      %30 = arith.cmpi slt, %28, %29 : vector<16x128xi32>
      %31 = arith.andi %11, %30 : vector<16x128xi1>
      %c0_14 = arith.constant 0 : index
      %c0_15 = arith.constant 0 : index
      %32 = vector.load %arg7[%c0_14, %c0_15] : memref<16x128xf32, #tpu.memory_space<vmem>>, vector<16x128xf32>
      %cst = arith.constant 0.000000e+00 : f32
      %33 = vector.broadcast %cst : f32 to vector<16x128xf32>
      %34 = arith.select %31, %15, %33 : vector<16x128xi1>, vector<16x128xf32>
      %35 = arith.addf %32, %34 : vector<16x128xf32>
      %c0_16 = arith.constant 0 : index
      %c0_17 = arith.constant 0 : index
      %36 = vector.load %arg7[%c0_16, %c0_17] : memref<16x128xf32, #tpu.memory_space<vmem>>, vector<16x128xf32>
      tpu.vector_store %arg7[%c0_16, %c0_17], %35 {strides = array<i32>} : memref<16x128xf32, #tpu.memory_space<vmem>>, vector<16x128xf32>,
      %c0_18 = arith.constant 0 : index
      %c0_19 = arith.constant 0 : index
      %37 = vector.load %arg8[%c0_18, %c0_19] : memref<16x128xf32, #tpu.memory_space<vmem>>, vector<16x128xf32>
      %38 = arith.extui %31 : vector<16x128xi1> to vector<16x128xi32>
      %39 = arith.sitofp %38 : vector<16x128xi32> to vector<16x128xf32>
      %40 = arith.addf %37, %39 : vector<16x128xf32>
      %c0_20 = arith.constant 0 : index
      %c0_21 = arith.constant 0 : index
      %41 = vector.load %arg8[%c0_20, %c0_21] : memref<16x128xf32, #tpu.memory_space<vmem>>, vector<16x128xf32>
      tpu.vector_store %arg8[%c0_20, %c0_21], %40 {strides = array<i32>} : memref<16x128xf32, #tpu.memory_space<vmem>>, vector<16x128xf32>,
    } else {
    }
    %c0_i32_11 = arith.constant 0 : i32
    %22 = arith.cmpi eq, %arg1, %c0_i32_11 : i32
    %23 = arith.extui %22 : i1 to i32
    %c0_i32_12 = arith.constant 0 : i32
    %24 = arith.cmpi ne, %23, %c0_i32_12 : i32
    scf.if %24 {
      %c0_13 = arith.constant 0 : index
      %c0_14 = arith.constant 0 : index
      %25 = vector.load %arg7[%c0_13, %c0_14] : memref<16x128xf32, #tpu.memory_space<vmem>>, vector<16x128xf32>
      %cst = arith.constant dense<0.000000e+00> : vector<128xf32>
      %26 = vector.multi_reduction <add>, %25, %cst [0] : vector<16x128xf32> to vector<128xf32>
      %27 = vector.shape_cast %26 : vector<128xf32> to vector<1x128xf32>
      %c0_15 = arith.constant 0 : index
      %c0_16 = arith.constant 0 : index
      %c0_17 = arith.constant 0 : index
      %28 = vector.load %arg5[%c0_15, %c0_16, %c0_17] : memref<1x1x128xf32, #tpu.memory_space<vmem>>, vector<1x1x128xf32>
      %29 = vector.shape_cast %28 : vector<1x1x128xf32> to vector<1x128xf32>
      %30 = vector.shape_cast %27 : vector<1x128xf32> to vector<1x1x128xf32>
      tpu.vector_store %arg5[%c0_15, %c0_16, %c0_17], %30 {strides = array<i32>} : memref<1x1x128xf32, #tpu.memory_space<vmem>>, vector<1x1x128xf32>,
      %c0_18 = arith.constant 0 : index
      %c0_19 = arith.constant 0 : index
      %31 = vector.load %arg8[%c0_18, %c0_19] : memref<16x128xf32, #tpu.memory_space<vmem>>, vector<16x128xf32>
      %cst_20 = arith.constant dense<0.000000e+00> : vector<128xf32>
      %32 = vector.multi_reduction <add>, %31, %cst_20 [0] : vector<16x128xf32> to vector<128xf32>
      %33 = vector.shape_cast %32 : vector<128xf32> to vector<1x128xf32>
      %c0_21 = arith.constant 0 : index
      %c0_22 = arith.constant 0 : index
      %c0_23 = arith.constant 0 : index
      %34 = vector.load %arg6[%c0_21, %c0_22, %c0_23] : memref<1x1x128xf32, #tpu.memory_space<vmem>>, vector<1x1x128xf32>
      %35 = vector.shape_cast %34 : vector<1x1x128xf32> to vector<1x128xf32>
      %36 = vector.shape_cast %33 : vector<1x128xf32> to vector<1x1x128xf32>
      tpu.vector_store %arg6[%c0_21, %c0_22, %c0_23], %36 {strides = array<i32>} : memref<1x1x128xf32, #tpu.memory_space<vmem>>, vector<1x1x128xf32>,
    } else {
    }
    return
  }
  func.func @transform_0(%arg0: i32, %arg1: i32) -> (i32, i32) {
    %c1_i32 = arith.constant 1 : i32
    %0 = arith.muli %arg0, %c1_i32 : i32
    %1 = arith.addi %0, %arg1 : i32
    %c0_i32 = arith.constant 0 : i32
    %2 = arith.minsi %1, %c0_i32 : i32
    %c0_i32_0 = arith.constant 0 : i32
    %c0_i32_1 = arith.constant 0 : i32
    return %2, %c0_i32_0 : i32, i32
  }
  func.func @transform_1(%arg0: i32, %arg1: i32) -> (i32, i32) {
    %c1_i32 = arith.constant 1 : i32
    %0 = arith.muli %arg0, %c1_i32 : i32
    %1 = arith.addi %0, %arg1 : i32
    %c0_i32 = arith.constant 0 : i32
    %2 = arith.minsi %1, %c0_i32 : i32
    %c0_i32_0 = arith.constant 0 : i32
    %c0_i32_1 = arith.constant 0 : i32
    return %2, %c0_i32_0 : i32, i32
  }
  func.func @transform_2(%arg0: i32, %arg1: i32) -> (i32, i32) {
    %c1_i32 = arith.constant 1 : i32
    %0 = arith.muli %arg0, %c1_i32 : i32
    %1 = arith.addi %0, %arg1 : i32
    %c0_i32 = arith.constant 0 : i32
    %2 = arith.minsi %1, %c0_i32 : i32
    %c0_i32_0 = arith.constant 0 : i32
    %c0_i32_1 = arith.constant 0 : i32
    return %2, %c0_i32_0 : i32, i32
  }
  func.func @transform_3(%arg0: i32, %arg1: i32) -> (i32, i32, i32) {
    %c0_i32 = arith.constant 0 : i32
    %c0_i32_0 = arith.constant 0 : i32
    %c0_i32_1 = arith.constant 0 : i32
    return %arg0, %c0_i32, %c0_i32_0 : i32, i32, i32
  }
  func.func @transform_4(%arg0: i32, %arg1: i32) -> (i32, i32, i32) {
    %c0_i32 = arith.constant 0 : i32
    %c0_i32_0 = arith.constant 0 : i32
    %c0_i32_1 = arith.constant 0 : i32
    return %arg0, %c0_i32, %c0_i32_0 : i32, i32, i32
  }
}

</mosaic_0001>

<llo_original>
// kernel: reconstruction_loss.1
$region0: #{reconstruction_loss.1}
  #allocation0 [shape = 'u32[]', space=smem, size = 0x4, offset = 0x4, fixed_abs, tag = 'smem constant byte address 0x4 - core index']
  #allocation1 [shape = 'u32[72,128]{1,0:T(1,128)}', space=vmem, size = 0x9000, scoped, tag = 'internal scratch']
  #allocation2 [shape = 'f32[16,128]{1,0:T(8,128)}', space=vmem, size = 0x2000, scoped, tag = 'scratch operand']
  #allocation3 [shape = 'f32[16,128]{1,0:T(8,128)}', space=vmem, size = 0x2000, scoped, tag = 'scratch operand']
  %s0 = inlined_call_operand.vmem [shape: f32[16,128], index: 0, kind: input, shape index: {}]
  %s1 = inlined_call_operand.vmem [shape: f32[16,128], index: 1, kind: input, shape index: {}]
  %s2 = inlined_call_operand.vmem [shape: s8[16,128], index: 2, kind: input, shape index: {}]
  %s3 = inlined_call_operand.vmem [shape: f32[1,1,128], index: 3, kind: output, shape index: {0}]
  %s4 = inlined_call_operand.vmem [shape: f32[1,1,128], index: 4, kind: output, shape index: {1}]
  %5 = xla_tuple %s3, %s4
  %s6 = sld [smem:[#allocation0]]
  $region46: #{reconstruction_loss.1} parent=0
    _
  %s8 = ssub.s32 1, %s6
  %s9 = scalar_select 0, %s8, %s6
  // Predicated region
  $region2: #{reconstruction_loss.1} parent=0 // pred_check
    _
  $region3: #{reconstruction_loss.1} parent=0 // pred_check_branch
    %11 = sbr.rel (0) target = $region5
  $region4: #{reconstruction_loss.1} parent=0 // pred_region
    %s12 = sadd.s32 0, 0
    %p13 = scmp.lt.s32.totalorder %s12, 0
    %s14 = scalar_select %p13, %s12, 0
    %s15 = smul.u32 2, %s14
    %p16 = scmp.lt.s32.totalorder %s15, 1
    %s17 = scalar_select %p16, %s15, 1
    %s18 = smul.addr %s17, 8
    %s19 = scalar_lea.vmem %s0, %s18
    %s20 = sadd.s32 0, 0
    %p21 = scmp.lt.s32.totalorder %s20, 0
    %s22 = scalar_select %p21, %s20, 0
    %s23 = smul.u32 2, %s22
  $region5: #{reconstruction_loss.1} parent=0 // pred_fallthru
    _
  // Predicated region
  $region6: #{reconstruction_loss.1} parent=0 // pred_check
    _
  $region7: #{reconstruction_loss.1} parent=0 // pred_check_branch
    %25 = sbr.rel (0) target = $region9
  $region8: #{reconstruction_loss.1} parent=0 // pred_region
    %s26 = sadd.s32 0, 0
    %p27 = scmp.lt.s32.totalorder %s26, 0
    %s28 = scalar_select %p27, %s26, 0
    %s29 = smul.u32 2, %s28
    %p30 = scmp.lt.s32.totalorder %s29, 1
    %s31 = scalar_select %p30, %s29, 1
    %s32 = smul.addr %s31, 8
    %s33 = scalar_lea.vmem %s1, %s32
    %s34 = sadd.s32 0, 0
    %p35 = scmp.lt.s32.totalorder %s34, 0
    %s36 = scalar_select %p35, %s34, 0
    %s37 = smul.u32 2, %s36
  $region9: #{reconstruction_loss.1} parent=0 // pred_fallthru
    _
  // Predicated region
  $region10: #{reconstruction_loss.1} parent=0 // pred_check
    _
  $region11: #{reconstruction_loss.1} parent=0 // pred_check_branch
    %39 = sbr.rel (0) target = $region13
  $region12: #{reconstruction_loss.1} parent=0 // pred_region
    %s40 = sadd.s32 0, 0
    %p41 = scmp.lt.s32.totalorder %s40, 0
    %s42 = scalar_select %p41, %s40, 0
    %s43 = smul.u32 2, %s42
    %p44 = scmp.lt.s32.totalorder %s43, 1
    %s45 = scalar_select %p44, %s43, 1
    %s46 = smul.addr %s45, 2
    %s47 = scalar_lea.vmem %s2, %s46
    %s48 = sadd.s32 0, 0
    %p49 = scmp.lt.s32.totalorder %s48, 0
    %s50 = scalar_select %p49, %s48, 0
    %s51 = smul.u32 2, %s50
  $region13: #{reconstruction_loss.1} parent=0 // pred_fallthru
    _
  %s52 = sadd.s32 0, 0
  %p53 = scmp.lt.s32.totalorder %s52, 0
  %s54 = scalar_select %p53, %s52, 0
  %s55 = smul.u32 2, %s54
  %p56 = scmp.lt.s32.totalorder %s55, 1
  %s57 = scalar_select %p56, %s55, 1
  %s58 = smul.addr %s57, 8
  %s59 = scalar_lea.vmem %s0, %s58
  %s60 = sadd.s32 0, 0
  %p61 = scmp.lt.s32.totalorder %s60, 0
  %s62 = scalar_select %p61, %s60, 0
  %s63 = smul.u32 2, %s62
  %p64 = scmp.lt.s32.totalorder %s63, 1
  %s65 = scalar_select %p64, %s63, 1
  %s66 = smul.addr %s65, 8
  %s67 = scalar_lea.vmem %s1, %s66
  %s68 = sadd.s32 0, 0
  %p69 = scmp.lt.s32.totalorder %s68, 0
  %s70 = scalar_select %p69, %s68, 0
  %s71 = smul.u32 2, %s70
  %p72 = scmp.lt.s32.totalorder %s71, 1
  %s73 = scalar_select %p72, %s71, 1
  %s74 = smul.addr %s73, 2
  %s75 = scalar_lea.vmem %s2, %s74
  %s76 = sadd.s32 0, 0
  %p77 = scmp.lt.s32.totalorder %s76, 0
  %s78 = scalar_select %p77, %s76, 0
  %s79 = smul.u32 2, %s78
  %p80 = scmp.lt.s32.totalorder %s79, 1
  %s81 = scalar_select %p80, %s79, 1
  %s82 = smul.addr %s81, 8
  %s83 = scalar_lea.vmem %s0, %s82
  %s84 = sadd.s32 0, 0
  %p85 = scmp.lt.s32.totalorder %s84, 0
  %s86 = scalar_select %p85, %s84, 0
  %s87 = smul.u32 2, %s86
  %s88 = sadd.s32 0, 0
  %p89 = scmp.lt.s32.totalorder %s88, 0
  %s90 = scalar_select %p89, %s88, 0
  %s91 = smul.u32 2, %s90
  %p92 = scmp.lt.s32.totalorder %s91, 1
  %s93 = scalar_select %p92, %s91, 1
  %s94 = smul.addr %s93, 8
  %s95 = scalar_lea.vmem %s1, %s94
  %s96 = sadd.s32 0, 0
  %p97 = scmp.lt.s32.totalorder %s96, 0
  %s98 = scalar_select %p97, %s96, 0
  %s99 = smul.u32 2, %s98
  %s100 = sadd.s32 0, 0
  %p101 = scmp.lt.s32.totalorder %s100, 0
  %s102 = scalar_select %p101, %s100, 0
  %s103 = smul.u32 2, %s102
  %p104 = scmp.lt.s32.totalorder %s103, 1
  %s105 = scalar_select %p104, %s103, 1
  %s106 = smul.addr %s105, 2
  %s107 = scalar_lea.vmem %s2, %s106
  %s108 = sadd.s32 0, 0
  %p109 = scmp.lt.s32.totalorder %s108, 0
  %s110 = scalar_select %p109, %s108, 0
  %s111 = smul.u32 2, %s110
  %p112 = scmp.eq.s32.totalorder 0, 0
  // Predicated region
  $region14: #{reconstruction_loss.1} parent=0 // pred_check
    %p113 = pneg %p112
  $region15: #{reconstruction_loss.1} parent=0 // pred_check_branch
    %115 = sbr.rel (%p113) target = $region17
  $region16: #{reconstruction_loss.1} parent=0 // pred_region
    %116 = vst [vmem:[#allocation2] sm:$0xff] 0.0
    %117 = vst [vmem:[#allocation2 + $0x8] sm:$0xff] 0.0
    %118 = vst [vmem:[#allocation3] sm:$0xff] 0.0
    %119 = vst [vmem:[#allocation3 + $0x8] sm:$0xff] 0.0
  $region17: #{reconstruction_loss.1} parent=0 // pred_fallthru
    _
  %s120 = sadd.s32 0, 0
  %v121 = vld [vmem:[%s107] sm:$0x3]
  %v122 = vld [vmem:[%s107 + $0x2] sm:$0x3]
  %v123 = vunpack.c.0.s8 %v121
  %v124 = vunpack.c.0.s8 %v122
  %vm125 = vcmp.ge.s32.totalorder %v123, 1
  %vm126 = vcmp.ge.s32.totalorder %v124, 1
  %vm127 = vcmp.lt.s32.totalorder %v123, 4
  %vm128 = vcmp.lt.s32.totalorder %v124, 4
  %vm129 = vmand %vm125, %vm127
  %vm130 = vmand %vm126, %vm128
  %v131 = vld [vmem:[%s83] sm:$0xff]
  %v132 = vld [vmem:[%s83 + $0x8] sm:$0xff]
  %v133 = vld [vmem:[%s95] sm:$0xff]
  %v134 = vld [vmem:[%s95 + $0x8] sm:$0xff]
  %v135 = vsub.f32 %v131, %v133
  %v136 = vsub.f32 %v132, %v134
  %v137 = vmul.f32 %v135, %v135
  %v138 = vmul.f32 %v136, %v136
  %p139 = scmp.lt.s32.totalorder %s120, 1
  // Predicated region
  $region18: #{reconstruction_loss.1} parent=0 // pred_check
    %p140 = pneg %p139
  $region19: #{reconstruction_loss.1} parent=0 // pred_check_branch
    %142 = sbr.rel (%p140) target = $region21
  $region20: #{reconstruction_loss.1} parent=0 // pred_region
    %v143 = vld [vmem:[#allocation2] sm:$0xff]
    %v144 = vld [vmem:[#allocation2 + $0x8] sm:$0xff]
    %v145 = vsel %vm129, %v137, 0.0
    %v146 = vsel %vm130, %v138, 0.0
    %v147 = vadd.f32 %v143, %v145
    %v148 = vadd.f32 %v144, %v146
    %149 = vst [vmem:[#allocation2] sm:$0xff] %v147
    %150 = vst [vmem:[#allocation2 + $0x8] sm:$0xff] %v148
    %v151 = vld [vmem:[#allocation3] sm:$0xff]
    %v152 = vld [vmem:[#allocation3 + $0x8] sm:$0xff]
    %v153 = vsel %vm129, 1, 0
    %v154 = vsel %vm130, 1, 0
    %v155 = vcvt.s32.f32 %v153
    %v156 = vcvt.s32.f32 %v154
    %v157 = vadd.f32 %v151, %v155
    %v158 = vadd.f32 %v152, %v156
    %159 = vst [vmem:[#allocation3] sm:$0xff] %v157
    %160 = vst [vmem:[#allocation3 + $0x8] sm:$0xff] %v158
  $region21: #{reconstruction_loss.1} parent=0 // pred_fallthru
    _
  %p161 = scmp.ge.s32.totalorder %s120, 1
  // Predicated region
  $region22: #{reconstruction_loss.1} parent=0 // pred_check
    %p162 = pneg %p161
  $region23: #{reconstruction_loss.1} parent=0 // pred_check_branch
    %164 = sbr.rel (%p162) target = $region25
  $region24: #{reconstruction_loss.1} parent=0 // pred_region
    %v165 = vlaneseq
    %v166 = vshrl.u32 %v165, 7
    %v167 = vadd.s32 %v166, 8
    %s168 = smul.u32 %s120, 16
    %v169 = vstv %s168
    %v170 = vadd.s32 %v169, %v166
    %v171 = vadd.s32 %v169, %v167
    %vm172 = vcmp.lt.s32.totalorder %v170, 16
    %vm173 = vcmp.lt.s32.totalorder %v171, 16
    %vm174 = vmand %vm129, %vm172
    %vm175 = vmand %vm130, %vm173
    %v176 = vld [vmem:[#allocation2] sm:$0xff]
    %v177 = vld [vmem:[#allocation2 + $0x8] sm:$0xff]
    %v178 = vsel %vm174, %v137, 0.0
    %v179 = vsel %vm175, %v138, 0.0
    %v180 = vadd.f32 %v176, %v178
    %v181 = vadd.f32 %v177, %v179
    %182 = vst [vmem:[#allocation2] sm:$0xff] %v180
    %183 = vst [vmem:[#allocation2 + $0x8] sm:$0xff] %v181
    %v184 = vld [vmem:[#allocation3] sm:$0xff]
    %v185 = vld [vmem:[#allocation3 + $0x8] sm:$0xff]
    %v186 = vsel %vm174, 1, 0
    %v187 = vsel %vm175, 1, 0
    %v188 = vcvt.s32.f32 %v186
    %v189 = vcvt.s32.f32 %v187
    %v190 = vadd.f32 %v184, %v188
    %v191 = vadd.f32 %v185, %v189
    %192 = vst [vmem:[#allocation3] sm:$0xff] %v190
    %193 = vst [vmem:[#allocation3 + $0x8] sm:$0xff] %v191
  $region25: #{reconstruction_loss.1} parent=0 // pred_fallthru
    _
  // Predicated region
  $region26: #{reconstruction_loss.1} parent=0 // pred_check
    %p194 = pneg %p112
  $region27: #{reconstruction_loss.1} parent=0 // pred_check_branch
    %196 = sbr.rel (%p194) target = $region29
  $region28: #{reconstruction_loss.1} parent=0 // pred_region
    %v197 = vld [vmem:[#allocation2] sm:$0xff]
    %v198 = vld [vmem:[#allocation2 + $0x8] sm:$0xff]
    %v199 = vadd.f32 %v197, %v198
    %v200 = vrot.slane %v199, 4
    %v201 = vadd.f32 %v199, %v200
    %v202 = vrot.slane %v201, 2
    %v203 = vadd.f32 %v201, %v202
    %v204 = vrot.slane %v203, 1
    %v205 = vadd.f32 %v203, %v204
    %206 = vst [vmem:[%s3] sm:$0x1] %v205
    %v207 = vld [vmem:[#allocation3] sm:$0xff]
    %v208 = vld [vmem:[#allocation3 + $0x8] sm:$0xff]
    %v209 = vadd.f32 %v207, %v208
    %v210 = vrot.slane %v209, 4
    %v211 = vadd.f32 %v209, %v210
    %v212 = vrot.slane %v211, 2
    %v213 = vadd.f32 %v211, %v212
    %v214 = vrot.slane %v213, 1
    %v215 = vadd.f32 %v213, %v214
    %216 = vst [vmem:[%s4] sm:$0x1] %v215
  $region29: #{reconstruction_loss.1} parent=0 // pred_fallthru
    _
  // Predicated region
  $region30: #{reconstruction_loss.1} parent=0 // pred_check
    _
  $region31: #{reconstruction_loss.1} parent=0 // pred_check_branch
    %218 = sbr.rel (0) target = $region33
  $region32: #{reconstruction_loss.1} parent=0 // pred_region
    _
  $region33: #{reconstruction_loss.1} parent=0 // pred_fallthru
    _
  // Predicated region
  $region34: #{reconstruction_loss.1} parent=0 // pred_check
    _
  $region35: #{reconstruction_loss.1} parent=0 // pred_check_branch
    %220 = sbr.rel (0) target = $region37
  $region36: #{reconstruction_loss.1} parent=0 // pred_region
    _
  $region37: #{reconstruction_loss.1} parent=0 // pred_fallthru
    _
  // Predicated region
  $region38: #{reconstruction_loss.1} parent=0 // pred_check
    _
  $region39: #{reconstruction_loss.1} parent=0 // pred_check_branch
    %222 = sbr.rel (0) target = $region41
  $region40: #{reconstruction_loss.1} parent=0 // pred_region
    _
  $region41: #{reconstruction_loss.1} parent=0 // pred_fallthru
    _
  // Predicated region
  $region42: #{reconstruction_loss.1} parent=0 // pred_check
    _
  $region43: #{reconstruction_loss.1} parent=0 // pred_check_branch
    %224 = sbr.rel (0) target = $region45
  $region44: #{reconstruction_loss.1} parent=0 // pred_region
    _
  $region45: #{reconstruction_loss.1} parent=0 // pred_fallthru
    _

</llo_original>
